<compile_context>
chip_gen: v5e
topology: v5e:2x2
jax: 0.10.0
libtpu: 0.0.40
codegen_flags: <defaults>
</compile_context>

<pallas_src>
import functools

import numpy as np
import jax
import jax.numpy as jnp
from jax.experimental import pallas as pl
from jax.experimental.pallas import tpu as pltpu

MASK16 = 0xFFFF
LANE = 128            # lane width (last dim of every block)
SUB = 8               # sublane granularity; also the inner row-chunk size
MAX_BLOCK_ROWS = 512  # rows per grid block for large inputs


def _round_up(x, m):
    return ((x + m - 1) // m) * m


# ---------- 32-bit helpers (values are int32 bit patterns of uint32 words) ----

def _u32(x):
    """Reinterpret the int32 bit pattern as uint32 (free, no data movement)."""
    return pltpu.bitcast(x, jnp.uint32)


def _ushr(x, k):
    """Logical right shift of the uint32 bit pattern in int32 x (1 VPU op)."""
    if k == 0:
        return x
    return pltpu.bitcast(_u32(x) >> k, jnp.int32)


def _carry(sum_lo, addend):
    """Carry-out (0/1 int32) of the unsigned 32-bit add that produced sum_lo."""
    return jnp.where(_u32(sum_lo) < _u32(addend), jnp.int32(1), jnp.int32(0))


def _mul32_vs(a, a_lo, a_hi, b, b_lo, b_hi):
    """Full 64-bit unsigned product of the uint32 bit patterns a (vector, with
    pre-split 16-bit halves) and b (scalar, pre-split). Returns (lo32, hi32)."""
    ll = a_lo * b_lo
    lh = a_lo * b_hi
    hl = a_hi * b_lo
    hh = a_hi * b_hi
    t = _ushr(ll, 16) + (lh & MASK16) + (hl & MASK16)
    lo = a * b                                   # wrapping low 32 bits
    hi = hh + _ushr(lh, 16) + _ushr(hl, 16) + _ushr(t, 16)
    return lo, hi


def _sar64(hi, lo, k):
    """Arithmetic right shift of the 64-bit value (hi, lo) by static k in [0, 63]."""
    if k == 0:
        return hi, lo
    if k < 32:
        return hi >> k, _ushr(lo, k) | (hi << (32 - k))
    if k == 32:
        return hi >> 31, hi
    return hi >> 31, hi >> (k - 32)


# ------------------------------- Pallas kernel --------------------------------

def _multihash_kernel(ch_ref, cl_ref, xh_ref, xl_ref, out_ref, *,
                      num_hashes, shift, chunk, coeffs_nonneg):
    """Hash a (TR, 128) tile of int64 inputs (split into hi/lo int32 planes).

    ch_ref / cl_ref : (num_hashes,) int32 SMEM  -- hi/lo words of hash_coeffs
    xh_ref / xl_ref : (TR, 128)     int32 VMEM  -- hi/lo words of the inputs
    out_ref         : (num_hashes, TR, 128)     if shift >= 32  (lo plane only)
                      (2, num_hashes, TR, 128)  otherwise       (hi, lo planes)
    """
    lo_only = shift >= 32
    n_chunks = xh_ref.shape[0] // chunk

    # Per-hash scalar preparation (scalar ALU; hoisted out of the row loop).
    coeffs = []
    for h in range(num_hashes):
        ch = ch_ref[h]
        cl = cl_ref[h]
        coeffs.append((
            ch, cl,
            ch & MASK16, (ch >> 16) & MASK16,      # 16-bit halves of ch
            cl & MASK16, (cl >> 16) & MASK16,      # 16-bit halves of cl
            -ch, -cl,                              # for the sign-correction masks
            None if coeffs_nonneg else (ch >> 31),
        ))

    @pl.loop(0, n_chunks)
    def _(j):
        off = pl.multiple_of(j * chunk, chunk)
        rows = pl.ds(off, chunk)
        xh = xh_ref[rows, :]
        xl = xl_ref[rows, :]
        sa = xh >> 31                              # 0 / -1 sign word of (a >> 32)
        # Hoisted 16-bit splits of the vector operands (shared by all hashes).
        xh_l, xh_h = xh & MASK16, _ushr(xh, 16)
        xl_l, xl_h = xl & MASK16, _ushr(xl, 16)

        for h in range(num_hashes):                # static unroll; num_hashes small
            ch, cl, ch_l, ch_h, cl_l, cl_h, nch, ncl, sb = coeffs[h]

            # high_product = (a >> 32) * (b >> 32)            (wrapping int64)
            hp_lo, hp_hi = _mul32_vs(xh, xh_l, xh_h, ch, ch_l, ch_h)
            hp_hi = hp_hi + (sa & nch)             # sa * ch  ==  sa & (-ch)
            # c1 = (a >> 32) * (b & 0xFFFFFFFF)
            c1_lo, c1_hi = _mul32_vs(xh, xh_l, xh_h, cl, cl_l, cl_h)
            c1_hi = c1_hi + (sa & ncl)             # sa * cl  ==  sa & (-cl)
            # c2 = (b >> 32) * (a & 0xFFFFFFFF)
            c2_lo, c2_hi = _mul32_vs(xl, xl_l, xl_h, ch, ch_l, ch_h)
            if not coeffs_nonneg:                  # trace-time specialization
                hp_hi = hp_hi + xh * sb
                c2_hi = c2_hi + sb * xl

            # cross_product = c1 + c2 (wrapping), then >> 32 (arithmetic)
            cr_lo = c1_lo + c2_lo
            cr_hi = c1_hi + c2_hi + _carry(cr_lo, c1_lo)
            # top_64 = high_product + (cross_product >> 32)   (wrapping)
            t_lo = hp_lo + cr_hi
            t_hi = hp_hi + (cr_hi >> 31) + _carry(t_lo, hp_lo)

            if lo_only:
                # (top_64 >> shift) with shift >= 32 depends on t_hi only; the
                # sign plane is reconstructed as (lo >> 31) in the wrapper.
                out_ref[h, rows, :] = t_hi >> (shift - 32)
            else:
                r_hi, r_lo = _sar64(t_hi, t_lo, shift)
                out_ref[0, h, rows, :] = r_hi
                out_ref[1, h, rows, :] = r_lo


# ---------------------------------- wrapper -----------------------------------

def multihash_forward(x_hi, x_lo, coeff_hi, coeff_lo, output_bits, *,
                      coeffs_nonneg=True, trailing_hash_axis=False):
    """MultiHash.forward.

    x_hi, x_lo         : int32 arrays (same shape) = hi/lo words of int64 input
    coeff_hi, coeff_lo : int32 (num_hashes,)       = hi/lo words of hash_coeffs
    coeffs_nonneg      : trace-time promise that hash_coeffs >= 0 (true for the
                         torch.randint((1 << 63) - 1) initializer).
    trailing_hash_axis : if True, return torch layout x.shape + (num_hashes,)
                         (extra transpose); default is hash-major
                         (num_hashes,) + x.shape.
    Returns (out_hi, out_lo): int32 word pairs of the int64 result.
    """
    orig_shape = x_hi.shape
    num_hashes = int(coeff_hi.shape[0])
    shift = 63 - output_bits
    lo_only = shift >= 32

    S = int(np.prod(orig_shape)) if len(orig_shape) else 1
    rows_needed = _round_up(max(S, 1), LANE) // LANE
    if rows_needed <= MAX_BLOCK_ROWS:
        grid = 1
        tr = _round_up(rows_needed, SUB)
    else:
        grid = -(-rows_needed // MAX_BLOCK_ROWS)
        tr = _round_up(-(-rows_needed // grid), SUB)
    R = grid * tr
    pad = R * LANE - S

    xh = x_hi.reshape(-1)
    xl = x_lo.reshape(-1)
    if pad:
        # TODO(synk): zero-copy path — accept pre-padded (R, 128) planes from the
        # caller to avoid this XLA pad copy on awkward sizes.
        xh = jnp.pad(xh, (0, pad))
        xl = jnp.pad(xl, (0, pad))
    xh = xh.reshape(R, LANE)
    xl = xl.reshape(R, LANE)

    kernel = functools.partial(
        _multihash_kernel, num_hashes=num_hashes, shift=shift,
        chunk=SUB, coeffs_nonneg=coeffs_nonneg)

    if lo_only:
        out_shape = jax.ShapeDtypeStruct((num_hashes, R, LANE), jnp.int32)
        out_spec = pl.BlockSpec((num_hashes, tr, LANE),
                                lambda i, ch, cl: (0, i, 0))
    else:
        out_shape = jax.ShapeDtypeStruct((2, num_hashes, R, LANE), jnp.int32)
        out_spec = pl.BlockSpec((2, num_hashes, tr, LANE),
                                lambda i, ch, cl: (0, 0, i, 0))

    out = pl.pallas_call(
        kernel,
        out_shape=out_shape,
        grid_spec=pltpu.PrefetchScalarGridSpec(
            num_scalar_prefetch=2,
            grid=(grid,),
            in_specs=[
                pl.BlockSpec((tr, LANE), lambda i, ch, cl: (i, 0)),
                pl.BlockSpec((tr, LANE), lambda i, ch, cl: (i, 0)),
            ],
            out_specs=out_spec,
        ),
        compiler_params=pltpu.CompilerParams(
            dimension_semantics=("parallel",)),
    )(coeff_hi, coeff_lo, xh, xl)

    def _unpack(plane):                       # (num_hashes, R, LANE) -> layout
        o = plane.reshape(num_hashes, R * LANE)
        if pad:
            o = o[:, :S]
        o = o.reshape((num_hashes,) + orig_shape)
        if trailing_hash_axis:
            o = jnp.moveaxis(o, 0, -1)
        return o

    if lo_only:
        out_lo = _unpack(out)
        out_hi = out_lo >> 31                 # sign word determined by lo (shift >= 32)
    else:
        out_hi = _unpack(out[0])
        out_lo = _unpack(out[1])
    return out_hi, out_lo


# ----------------------------------- main --------------------------------------

if __name__ == "__main__":
    key = jax.random.PRNGKey(0)
    k1, k2, k3, k4 = jax.random.split(key, 4)

    num_hashes = 4
    output_bits = 20
    x_shape = (2, 4, 16, 16)

    # int64 input represented as (hi, lo) int32 word pairs (full 64-bit range).
    x_hi = jax.lax.bitcast_convert_type(
        jax.random.bits(k1, x_shape, dtype=jnp.uint32), jnp.int32)
    x_lo = jax.lax.bitcast_convert_type(
        jax.random.bits(k2, x_shape, dtype=jnp.uint32), jnp.int32)

    # hash_coeffs ~ torch.randint((1 << 63) - 1, (num_hashes,)): nonneg int64 < 2^63.
    c_hi = jax.lax.bitcast_convert_type(
        jax.random.bits(k3, (num_hashes,), dtype=jnp.uint32) & jnp.uint32(0x7FFFFFFF),
        jnp.int32)
    c_lo = jax.lax.bitcast_convert_type(
        jax.random.bits(k4, (num_hashes,), dtype=jnp.uint32), jnp.int32)

    # ---- numpy int64 reference (exact semantics of multiply_top_64) ----
    def to_i64(hi, lo):
        hi = np.asarray(hi, dtype=np.int64)
        lo = np.asarray(np.asarray(lo, dtype=np.int32).view(np.uint32),
                        dtype=np.int64)
        return (hi << 32) | lo

    def ref_multihash(x64, c64, obits):
        with np.errstate(over="ignore"):
            a = x64[..., None]
            b = c64
            ha, la = a >> 32, a & np.int64(0xFFFFFFFF)
            hb, lb = b >> 32, b & np.int64(0xFFFFFFFF)
            hp = ha * hb
            cp = (ha * lb + hb * la) >> 32
            return (hp + cp) >> (63 - obits)

    x64 = to_i64(np.array(x_hi), np.array(x_lo))
    c64 = to_i64(np.array(c_hi), np.array(c_lo))

    # 1) fast path: shift >= 32, hash-major layout (no wrapper transpose).
    oh, ol = multihash_forward(x_hi, x_lo, c_hi, c_lo, output_bits)
    oh, ol = jax.block_until_ready((oh, ol))
    got = to_i64(np.array(oh), np.array(ol))
    ref = np.moveaxis(ref_multihash(x64, c64, output_bits), -1, 0)
    assert got.shape == (num_hashes,) + x_shape
    assert np.array_equal(got, ref), "hash-major output mismatch"

    # 2) drop-in torch layout (trailing num_hashes axis).
    oh, ol = multihash_forward(x_hi, x_lo, c_hi, c_lo, output_bits,
                               trailing_hash_axis=True)
    oh, ol = jax.block_until_ready((oh, ol))
    got = to_i64(np.array(oh), np.array(ol))
    ref = ref_multihash(x64, c64, output_bits)
    assert got.shape == x_shape + (num_hashes,)
    assert np.array_equal(got, ref), "trailing-axis output mismatch"

    # 3) general path: shift < 32 (two output planes, full 64-bit sar).
    output_bits_wide = 40
    oh, ol = multihash_forward(x_hi, x_lo, c_hi, c_lo, output_bits_wide,
                               trailing_hash_axis=True)
    oh, ol = jax.block_until_ready((oh, ol))
    got = to_i64(np.array(oh), np.array(ol))
    ref = ref_multihash(x64, c64, output_bits_wide)
    assert np.array_equal(got, ref), "general-path output mismatch"

    print("KERNEL_OK")
</pallas_src>

<mosaic_0001>
module attributes {stable_mosaic.version = 11 : i64} {
  func.func @_multihash_kernel(%arg0: i32, %arg1: memref<4xi32, #tpu.memory_space<smem>>, %arg2: memref<4xi32, #tpu.memory_space<smem>>, %arg3: memref<16x128xi32, #tpu.memory_space<vmem>>, %arg4: memref<16x128xi32, #tpu.memory_space<vmem>>, %arg5: memref<4x16x128xi32, #tpu.memory_space<vmem>>) attributes {dimension_semantics = [#tpu.dimension_semantics<parallel>], iteration_bounds = array<i64: 1>, scalar_prefetch = 2 : i64, scratch_operands = 0 : i64, tpu.core_type = #tpu.core_type<tc>, window_params = [{transform_indices = @transform_0, window_bounds = array<i64: 16, 128>}, {transform_indices = @transform_1, window_bounds = array<i64: 16, 128>}, {transform_indices = @transform_2, window_bounds = array<i64: 4, 16, 128>}]} {
    %c0 = arith.constant 0 : index
    %0 = memref.load %arg1[%c0] : memref<4xi32, #tpu.memory_space<smem>>
    %c0_0 = arith.constant 0 : index
    %1 = memref.load %arg2[%c0_0] : memref<4xi32, #tpu.memory_space<smem>>
    %c65535_i32 = arith.constant 65535 : i32
    %2 = arith.andi %0, %c65535_i32 : i32
    %c16_i32 = arith.constant 16 : i32
    %3 = arith.shrsi %0, %c16_i32 : i32
    %c65535_i32_1 = arith.constant 65535 : i32
    %4 = arith.andi %3, %c65535_i32_1 : i32
    %c65535_i32_2 = arith.constant 65535 : i32
    %5 = arith.andi %1, %c65535_i32_2 : i32
    %c16_i32_3 = arith.constant 16 : i32
    %6 = arith.shrsi %1, %c16_i32_3 : i32
    %c65535_i32_4 = arith.constant 65535 : i32
    %7 = arith.andi %6, %c65535_i32_4 : i32
    %c0_i32 = arith.constant 0 : i32
    %8 = arith.subi %c0_i32, %0 : i32
    %c0_i32_5 = arith.constant 0 : i32
    %9 = arith.subi %c0_i32_5, %1 : i32
    %c1 = arith.constant 1 : index
    %10 = memref.load %arg1[%c1] : memref<4xi32, #tpu.memory_space<smem>>
    %c1_6 = arith.constant 1 : index
    %11 = memref.load %arg2[%c1_6] : memref<4xi32, #tpu.memory_space<smem>>
    %c65535_i32_7 = arith.constant 65535 : i32
    %12 = arith.andi %10, %c65535_i32_7 : i32
    %c16_i32_8 = arith.constant 16 : i32
    %13 = arith.shrsi %10, %c16_i32_8 : i32
    %c65535_i32_9 = arith.constant 65535 : i32
    %14 = arith.andi %13, %c65535_i32_9 : i32
    %c65535_i32_10 = arith.constant 65535 : i32
    %15 = arith.andi %11, %c65535_i32_10 : i32
    %c16_i32_11 = arith.constant 16 : i32
    %16 = arith.shrsi %11, %c16_i32_11 : i32
    %c65535_i32_12 = arith.constant 65535 : i32
    %17 = arith.andi %16, %c65535_i32_12 : i32
    %c0_i32_13 = arith.constant 0 : i32
    %18 = arith.subi %c0_i32_13, %10 : i32
    %c0_i32_14 = arith.constant 0 : i32
    %19 = arith.subi %c0_i32_14, %11 : i32
    %c2 = arith.constant 2 : index
    %20 = memref.load %arg1[%c2] : memref<4xi32, #tpu.memory_space<smem>>
    %c2_15 = arith.constant 2 : index
    %21 = memref.load %arg2[%c2_15] : memref<4xi32, #tpu.memory_space<smem>>
    %c65535_i32_16 = arith.constant 65535 : i32
    %22 = arith.andi %20, %c65535_i32_16 : i32
    %c16_i32_17 = arith.constant 16 : i32
    %23 = arith.shrsi %20, %c16_i32_17 : i32
    %c65535_i32_18 = arith.constant 65535 : i32
    %24 = arith.andi %23, %c65535_i32_18 : i32
    %c65535_i32_19 = arith.constant 65535 : i32
    %25 = arith.andi %21, %c65535_i32_19 : i32
    %c16_i32_20 = arith.constant 16 : i32
    %26 = arith.shrsi %21, %c16_i32_20 : i32
    %c65535_i32_21 = arith.constant 65535 : i32
    %27 = arith.andi %26, %c65535_i32_21 : i32
    %c0_i32_22 = arith.constant 0 : i32
    %28 = arith.subi %c0_i32_22, %20 : i32
    %c0_i32_23 = arith.constant 0 : i32
    %29 = arith.subi %c0_i32_23, %21 : i32
    %c3 = arith.constant 3 : index
    %30 = memref.load %arg1[%c3] : memref<4xi32, #tpu.memory_space<smem>>
    %c3_24 = arith.constant 3 : index
    %31 = memref.load %arg2[%c3_24] : memref<4xi32, #tpu.memory_space<smem>>
    %c65535_i32_25 = arith.constant 65535 : i32
    %32 = arith.andi %30, %c65535_i32_25 : i32
    %c16_i32_26 = arith.constant 16 : i32
    %33 = arith.shrsi %30, %c16_i32_26 : i32
    %c65535_i32_27 = arith.constant 65535 : i32
    %34 = arith.andi %33, %c65535_i32_27 : i32
    %c65535_i32_28 = arith.constant 65535 : i32
    %35 = arith.andi %31, %c65535_i32_28 : i32
    %c16_i32_29 = arith.constant 16 : i32
    %36 = arith.shrsi %31, %c16_i32_29 : i32
    %c65535_i32_30 = arith.constant 65535 : i32
    %37 = arith.andi %36, %c65535_i32_30 : i32
    %c0_i32_31 = arith.constant 0 : i32
    %38 = arith.subi %c0_i32_31, %30 : i32
    %c0_i32_32 = arith.constant 0 : i32
    %39 = arith.subi %c0_i32_32, %31 : i32
    %c0_i32_33 = arith.constant 0 : i32
    %c2_i32 = arith.constant 2 : i32
    %40 = arith.addi %c0_i32_33, %c2_i32 : i32
    %c1_i32 = arith.constant 1 : i32
    scf.for %arg6 = %c0_i32_33 to %40 step %c1_i32  : i32 {
      %c1_i32_35 = arith.constant 1 : i32
      %41 = arith.muli %arg6, %c1_i32_35 : i32
      %c0_i32_36 = arith.constant 0 : i32
      %42 = arith.addi %c0_i32_36, %41 : i32
      %c8_i32 = arith.constant 8 : i32
      %43 = arith.muli %42, %c8_i32 : i32
      %44 = tpu.assume_multiple %43, 8 : i32
      %45 = arith.index_cast %44 : i32 to index
      %c0_37 = arith.constant 0 : index
      %46 = vector.load %arg3[%45, %c0_37] : memref<16x128xi32, #tpu.memory_space<vmem>>, vector<8x128xi32>
      %47 = arith.index_cast %44 : i32 to index
      %c0_38 = arith.constant 0 : index
      %48 = vector.load %arg4[%47, %c0_38] : memref<16x128xi32, #tpu.memory_space<vmem>>, vector<8x128xi32>
      %c31_i32 = arith.constant 31 : i32
      %49 = vector.broadcast %c31_i32 : i32 to vector<8x128xi32>
      %50 = arith.shrsi %46, %49 : vector<8x128xi32>
      %c65535_i32_39 = arith.constant 65535 : i32
      %51 = vector.broadcast %c65535_i32_39 : i32 to vector<8x128xi32>
      %52 = arith.andi %46, %51 : vector<8x128xi32>
      %53 = tpu.bitcast %46 : vector<8x128xi32> -> vector<8x128xi32>
      %c16_i32_40 = arith.constant 16 : i32
      %54 = vector.broadcast %c16_i32_40 : i32 to vector<8x128xi32>
      %55 = arith.shrui %53, %54 : vector<8x128xi32>
      %56 = tpu.bitcast %55 : vector<8x128xi32> -> vector<8x128xi32>
      %c65535_i32_41 = arith.constant 65535 : i32
      %57 = vector.broadcast %c65535_i32_41 : i32 to vector<8x128xi32>
      %58 = arith.andi %48, %57 : vector<8x128xi32>
      %59 = tpu.bitcast %48 : vector<8x128xi32> -> vector<8x128xi32>
      %c16_i32_42 = arith.constant 16 : i32
      %60 = vector.broadcast %c16_i32_42 : i32 to vector<8x128xi32>
      %61 = arith.shrui %59, %60 : vector<8x128xi32>
      %62 = tpu.bitcast %61 : vector<8x128xi32> -> vector<8x128xi32>
      %63 = vector.broadcast %2 : i32 to vector<8x128xi32>
      %64 = arith.muli %52, %63 : vector<8x128xi32>
      %65 = vector.broadcast %4 : i32 to vector<8x128xi32>
      %66 = arith.muli %52, %65 : vector<8x128xi32>
      %67 = vector.broadcast %2 : i32 to vector<8x128xi32>
      %68 = arith.muli %56, %67 : vector<8x128xi32>
      %69 = vector.broadcast %4 : i32 to vector<8x128xi32>
      %70 = arith.muli %56, %69 : vector<8x128xi32>
      %71 = tpu.bitcast %64 : vector<8x128xi32> -> vector<8x128xi32>
      %c16_i32_43 = arith.constant 16 : i32
      %72 = vector.broadcast %c16_i32_43 : i32 to vector<8x128xi32>
      %73 = arith.shrui %71, %72 : vector<8x128xi32>
      %74 = tpu.bitcast %73 : vector<8x128xi32> -> vector<8x128xi32>
      %c65535_i32_44 = arith.constant 65535 : i32
      %75 = vector.broadcast %c65535_i32_44 : i32 to vector<8x128xi32>
      %76 = arith.andi %66, %75 : vector<8x128xi32>
      %77 = arith.addi %74, %76 : vector<8x128xi32>
      %c65535_i32_45 = arith.constant 65535 : i32
      %78 = vector.broadcast %c65535_i32_45 : i32 to vector<8x128xi32>
      %79 = arith.andi %68, %78 : vector<8x128xi32>
      %80 = arith.addi %77, %79 : vector<8x128xi32>
      %81 = vector.broadcast %0 : i32 to vector<8x128xi32>
      %82 = arith.muli %46, %81 : vector<8x128xi32>
      %83 = tpu.bitcast %66 : vector<8x128xi32> -> vector<8x128xi32>
      %c16_i32_46 = arith.constant 16 : i32
      %84 = vector.broadcast %c16_i32_46 : i32 to vector<8x128xi32>
      %85 = arith.shrui %83, %84 : vector<8x128xi32>
      %86 = tpu.bitcast %85 : vector<8x128xi32> -> vector<8x128xi32>
      %87 = arith.addi %70, %86 : vector<8x128xi32>
      %88 = tpu.bitcast %68 : vector<8x128xi32> -> vector<8x128xi32>
      %c16_i32_47 = arith.constant 16 : i32
      %89 = vector.broadcast %c16_i32_47 : i32 to vector<8x128xi32>
      %90 = arith.shrui %88, %89 : vector<8x128xi32>
      %91 = tpu.bitcast %90 : vector<8x128xi32> -> vector<8x128xi32>
      %92 = arith.addi %87, %91 : vector<8x128xi32>
      %93 = tpu.bitcast %80 : vector<8x128xi32> -> vector<8x128xi32>
      %c16_i32_48 = arith.constant 16 : i32
      %94 = vector.broadcast %c16_i32_48 : i32 to vector<8x128xi32>
      %95 = arith.shrui %93, %94 : vector<8x128xi32>
      %96 = tpu.bitcast %95 : vector<8x128xi32> -> vector<8x128xi32>
      %97 = arith.addi %92, %96 : vector<8x128xi32>
      %98 = vector.broadcast %8 : i32 to vector<8x128xi32>
      %99 = arith.andi %50, %98 : vector<8x128xi32>
      %100 = arith.addi %97, %99 : vector<8x128xi32>
      %101 = vector.broadcast %5 : i32 to vector<8x128xi32>
      %102 = arith.muli %52, %101 : vector<8x128xi32>
      %103 = vector.broadcast %7 : i32 to vector<8x128xi32>
      %104 = arith.muli %52, %103 : vector<8x128xi32>
      %105 = vector.broadcast %5 : i32 to vector<8x128xi32>
      %106 = arith.muli %56, %105 : vector<8x128xi32>
      %107 = vector.broadcast %7 : i32 to vector<8x128xi32>
      %108 = arith.muli %56, %107 : vector<8x128xi32>
      %109 = tpu.bitcast %102 : vector<8x128xi32> -> vector<8x128xi32>
      %c16_i32_49 = arith.constant 16 : i32
      %110 = vector.broadcast %c16_i32_49 : i32 to vector<8x128xi32>
      %111 = arith.shrui %109, %110 : vector<8x128xi32>
      %112 = tpu.bitcast %111 : vector<8x128xi32> -> vector<8x128xi32>
      %c65535_i32_50 = arith.constant 65535 : i32
      %113 = vector.broadcast %c65535_i32_50 : i32 to vector<8x128xi32>
      %114 = arith.andi %104, %113 : vector<8x128xi32>
      %115 = arith.addi %112, %114 : vector<8x128xi32>
      %c65535_i32_51 = arith.constant 65535 : i32
      %116 = vector.broadcast %c65535_i32_51 : i32 to vector<8x128xi32>
      %117 = arith.andi %106, %116 : vector<8x128xi32>
      %118 = arith.addi %115, %117 : vector<8x128xi32>
      %119 = vector.broadcast %1 : i32 to vector<8x128xi32>
      %120 = arith.muli %46, %119 : vector<8x128xi32>
      %121 = tpu.bitcast %104 : vector<8x128xi32> -> vector<8x128xi32>
      %c16_i32_52 = arith.constant 16 : i32
      %122 = vector.broadcast %c16_i32_52 : i32 to vector<8x128xi32>
      %123 = arith.shrui %121, %122 : vector<8x128xi32>
      %124 = tpu.bitcast %123 : vector<8x128xi32> -> vector<8x128xi32>
      %125 = arith.addi %108, %124 : vector<8x128xi32>
      %126 = tpu.bitcast %106 : vector<8x128xi32> -> vector<8x128xi32>
      %c16_i32_53 = arith.constant 16 : i32
      %127 = vector.broadcast %c16_i32_53 : i32 to vector<8x128xi32>
      %128 = arith.shrui %126, %127 : vector<8x128xi32>
      %129 = tpu.bitcast %128 : vector<8x128xi32> -> vector<8x128xi32>
      %130 = arith.addi %125, %129 : vector<8x128xi32>
      %131 = tpu.bitcast %118 : vector<8x128xi32> -> vector<8x128xi32>
      %c16_i32_54 = arith.constant 16 : i32
      %132 = vector.broadcast %c16_i32_54 : i32 to vector<8x128xi32>
      %133 = arith.shrui %131, %132 : vector<8x128xi32>
      %134 = tpu.bitcast %133 : vector<8x128xi32> -> vector<8x128xi32>
      %135 = arith.addi %130, %134 : vector<8x128xi32>
      %136 = vector.broadcast %9 : i32 to vector<8x128xi32>
      %137 = arith.andi %50, %136 : vector<8x128xi32>
      %138 = arith.addi %135, %137 : vector<8x128xi32>
      %139 = vector.broadcast %2 : i32 to vector<8x128xi32>
      %140 = arith.muli %58, %139 : vector<8x128xi32>
      %141 = vector.broadcast %4 : i32 to vector<8x128xi32>
      %142 = arith.muli %58, %141 : vector<8x128xi32>
      %143 = vector.broadcast %2 : i32 to vector<8x128xi32>
      %144 = arith.muli %62, %143 : vector<8x128xi32>
      %145 = vector.broadcast %4 : i32 to vector<8x128xi32>
      %146 = arith.muli %62, %145 : vector<8x128xi32>
      %147 = tpu.bitcast %140 : vector<8x128xi32> -> vector<8x128xi32>
      %c16_i32_55 = arith.constant 16 : i32
      %148 = vector.broadcast %c16_i32_55 : i32 to vector<8x128xi32>
      %149 = arith.shrui %147, %148 : vector<8x128xi32>
      %150 = tpu.bitcast %149 : vector<8x128xi32> -> vector<8x128xi32>
      %c65535_i32_56 = arith.constant 65535 : i32
      %151 = vector.broadcast %c65535_i32_56 : i32 to vector<8x128xi32>
      %152 = arith.andi %142, %151 : vector<8x128xi32>
      %153 = arith.addi %150, %152 : vector<8x128xi32>
      %c65535_i32_57 = arith.constant 65535 : i32
      %154 = vector.broadcast %c65535_i32_57 : i32 to vector<8x128xi32>
      %155 = arith.andi %144, %154 : vector<8x128xi32>
      %156 = arith.addi %153, %155 : vector<8x128xi32>
      %157 = vector.broadcast %0 : i32 to vector<8x128xi32>
      %158 = arith.muli %48, %157 : vector<8x128xi32>
      %159 = tpu.bitcast %142 : vector<8x128xi32> -> vector<8x128xi32>
      %c16_i32_58 = arith.constant 16 : i32
      %160 = vector.broadcast %c16_i32_58 : i32 to vector<8x128xi32>
      %161 = arith.shrui %159, %160 : vector<8x128xi32>
      %162 = tpu.bitcast %161 : vector<8x128xi32> -> vector<8x128xi32>
      %163 = arith.addi %146, %162 : vector<8x128xi32>
      %164 = tpu.bitcast %144 : vector<8x128xi32> -> vector<8x128xi32>
      %c16_i32_59 = arith.constant 16 : i32
      %165 = vector.broadcast %c16_i32_59 : i32 to vector<8x128xi32>
      %166 = arith.shrui %164, %165 : vector<8x128xi32>
      %167 = tpu.bitcast %166 : vector<8x128xi32> -> vector<8x128xi32>
      %168 = arith.addi %163, %167 : vector<8x128xi32>
      %169 = tpu.bitcast %156 : vector<8x128xi32> -> vector<8x128xi32>
      %c16_i32_60 = arith.constant 16 : i32
      %170 = vector.broadcast %c16_i32_60 : i32 to vector<8x128xi32>
      %171 = arith.shrui %169, %170 : vector<8x128xi32>
      %172 = tpu.bitcast %171 : vector<8x128xi32> -> vector<8x128xi32>
      %173 = arith.addi %168, %172 : vector<8x128xi32>
      %174 = arith.addi %120, %158 : vector<8x128xi32>
      %175 = arith.addi %138, %173 : vector<8x128xi32>
      %176 = tpu.bitcast %174 : vector<8x128xi32> -> vector<8x128xi32>
      %177 = tpu.bitcast %120 : vector<8x128xi32> -> vector<8x128xi32>
      %178 = arith.cmpi ult, %176, %177 : vector<8x128xi32>
      %c1_i32_61 = arith.constant 1 : i32
      %c0_i32_62 = arith.constant 0 : i32
      %179 = vector.broadcast %c1_i32_61 : i32 to vector<8x128xi32>
      %180 = vector.broadcast %c0_i32_62 : i32 to vector<8x128xi32>
      %181 = arith.select %178, %179, %180 : vector<8x128xi1>, vector<8x128xi32>
      %182 = arith.addi %175, %181 : vector<8x128xi32>
      %183 = arith.addi %82, %182 : vector<8x128xi32>
      %c31_i32_63 = arith.constant 31 : i32
      %184 = vector.broadcast %c31_i32_63 : i32 to vector<8x128xi32>
      %185 = arith.shrsi %182, %184 : vector<8x128xi32>
      %186 = arith.addi %100, %185 : vector<8x128xi32>
      %187 = tpu.bitcast %183 : vector<8x128xi32> -> vector<8x128xi32>
      %188 = tpu.bitcast %82 : vector<8x128xi32> -> vector<8x128xi32>
      %189 = arith.cmpi ult, %187, %188 : vector<8x128xi32>
      %c1_i32_64 = arith.constant 1 : i32
      %c0_i32_65 = arith.constant 0 : i32
      %190 = vector.broadcast %c1_i32_64 : i32 to vector<8x128xi32>
      %191 = vector.broadcast %c0_i32_65 : i32 to vector<8x128xi32>
      %192 = arith.select %189, %190, %191 : vector<8x128xi1>, vector<8x128xi32>
      %193 = arith.addi %186, %192 : vector<8x128xi32>
      %c11_i32 = arith.constant 11 : i32
      %194 = vector.broadcast %c11_i32 : i32 to vector<8x128xi32>
      %195 = arith.shrsi %193, %194 : vector<8x128xi32>
      %c0_66 = arith.constant 0 : index
      %196 = arith.index_cast %44 : i32 to index
      %c0_67 = arith.constant 0 : index
      %197 = vector.load %arg5[%c0_66, %196, %c0_67] : memref<4x16x128xi32, #tpu.memory_space<vmem>>, vector<1x8x128xi32>
      %198 = vector.shape_cast %197 : vector<1x8x128xi32> to vector<8x128xi32>
      %199 = vector.shape_cast %195 : vector<8x128xi32> to vector<1x8x128xi32>
      tpu.vector_store %arg5[%c0_66, %196, %c0_67], %199 {strides = array<i32>} : memref<4x16x128xi32, #tpu.memory_space<vmem>>, vector<1x8x128xi32>,
      %200 = vector.broadcast %12 : i32 to vector<8x128xi32>
      %201 = arith.muli %52, %200 : vector<8x128xi32>
      %202 = vector.broadcast %14 : i32 to vector<8x128xi32>
      %203 = arith.muli %52, %202 : vector<8x128xi32>
      %204 = vector.broadcast %12 : i32 to vector<8x128xi32>
      %205 = arith.muli %56, %204 : vector<8x128xi32>
      %206 = vector.broadcast %14 : i32 to vector<8x128xi32>
      %207 = arith.muli %56, %206 : vector<8x128xi32>
      %208 = tpu.bitcast %201 : vector<8x128xi32> -> vector<8x128xi32>
      %c16_i32_68 = arith.constant 16 : i32
      %209 = vector.broadcast %c16_i32_68 : i32 to vector<8x128xi32>
      %210 = arith.shrui %208, %209 : vector<8x128xi32>
      %211 = tpu.bitcast %210 : vector<8x128xi32> -> vector<8x128xi32>
      %c65535_i32_69 = arith.constant 65535 : i32
      %212 = vector.broadcast %c65535_i32_69 : i32 to vector<8x128xi32>
      %213 = arith.andi %203, %212 : vector<8x128xi32>
      %214 = arith.addi %211, %213 : vector<8x128xi32>
      %c65535_i32_70 = arith.constant 65535 : i32
      %215 = vector.broadcast %c65535_i32_70 : i32 to vector<8x128xi32>
      %216 = arith.andi %205, %215 : vector<8x128xi32>
      %217 = arith.addi %214, %216 : vector<8x128xi32>
      %218 = vector.broadcast %10 : i32 to vector<8x128xi32>
      %219 = arith.muli %46, %218 : vector<8x128xi32>
      %220 = tpu.bitcast %203 : vector<8x128xi32> -> vector<8x128xi32>
      %c16_i32_71 = arith.constant 16 : i32
      %221 = vector.broadcast %c16_i32_71 : i32 to vector<8x128xi32>
      %222 = arith.shrui %220, %221 : vector<8x128xi32>
      %223 = tpu.bitcast %222 : vector<8x128xi32> -> vector<8x128xi32>
      %224 = arith.addi %207, %223 : vector<8x128xi32>
      %225 = tpu.bitcast %205 : vector<8x128xi32> -> vector<8x128xi32>
      %c16_i32_72 = arith.constant 16 : i32
      %226 = vector.broadcast %c16_i32_72 : i32 to vector<8x128xi32>
      %227 = arith.shrui %225, %226 : vector<8x128xi32>
      %228 = tpu.bitcast %227 : vector<8x128xi32> -> vector<8x128xi32>
      %229 = arith.addi %224, %228 : vector<8x128xi32>
      %230 = tpu.bitcast %217 : vector<8x128xi32> -> vector<8x128xi32>
      %c16_i32_73 = arith.constant 16 : i32
      %231 = vector.broadcast %c16_i32_73 : i32 to vector<8x128xi32>
      %232 = arith.shrui %230, %231 : vector<8x128xi32>
      %233 = tpu.bitcast %232 : vector<8x128xi32> -> vector<8x128xi32>
      %234 = arith.addi %229, %233 : vector<8x128xi32>
      %235 = vector.broadcast %18 : i32 to vector<8x128xi32>
      %236 = arith.andi %50, %235 : vector<8x128xi32>
      %237 = arith.addi %234, %236 : vector<8x128xi32>
      %238 = vector.broadcast %15 : i32 to vector<8x128xi32>
      %239 = arith.muli %52, %238 : vector<8x128xi32>
      %240 = vector.broadcast %17 : i32 to vector<8x128xi32>
      %241 = arith.muli %52, %240 : vector<8x128xi32>
      %242 = vector.broadcast %15 : i32 to vector<8x128xi32>
      %243 = arith.muli %56, %242 : vector<8x128xi32>
      %244 = vector.broadcast %17 : i32 to vector<8x128xi32>
      %245 = arith.muli %56, %244 : vector<8x128xi32>
      %246 = tpu.bitcast %239 : vector<8x128xi32> -> vector<8x128xi32>
      %c16_i32_74 = arith.constant 16 : i32
      %247 = vector.broadcast %c16_i32_74 : i32 to vector<8x128xi32>
      %248 = arith.shrui %246, %247 : vector<8x128xi32>
      %249 = tpu.bitcast %248 : vector<8x128xi32> -> vector<8x128xi32>
      %c65535_i32_75 = arith.constant 65535 : i32
      %250 = vector.broadcast %c65535_i32_75 : i32 to vector<8x128xi32>
      %251 = arith.andi %241, %250 : vector<8x128xi32>
      %252 = arith.addi %249, %251 : vector<8x128xi32>
      %c65535_i32_76 = arith.constant 65535 : i32
      %253 = vector.broadcast %c65535_i32_76 : i32 to vector<8x128xi32>
      %254 = arith.andi %243, %253 : vector<8x128xi32>
      %255 = arith.addi %252, %254 : vector<8x128xi32>
      %256 = vector.broadcast %11 : i32 to vector<8x128xi32>
      %257 = arith.muli %46, %256 : vector<8x128xi32>
      %258 = tpu.bitcast %241 : vector<8x128xi32> -> vector<8x128xi32>
      %c16_i32_77 = arith.constant 16 : i32
      %259 = vector.broadcast %c16_i32_77 : i32 to vector<8x128xi32>
      %260 = arith.shrui %258, %259 : vector<8x128xi32>
      %261 = tpu.bitcast %260 : vector<8x128xi32> -> vector<8x128xi32>
      %262 = arith.addi %245, %261 : vector<8x128xi32>
      %263 = tpu.bitcast %243 : vector<8x128xi32> -> vector<8x128xi32>
      %c16_i32_78 = arith.constant 16 : i32
      %264 = vector.broadcast %c16_i32_78 : i32 to vector<8x128xi32>
      %265 = arith.shrui %263, %264 : vector<8x128xi32>
      %266 = tpu.bitcast %265 : vector<8x128xi32> -> vector<8x128xi32>
      %267 = arith.addi %262, %266 : vector<8x128xi32>
      %268 = tpu.bitcast %255 : vector<8x128xi32> -> vector<8x128xi32>
      %c16_i32_79 = arith.constant 16 : i32
      %269 = vector.broadcast %c16_i32_79 : i32 to vector<8x128xi32>
      %270 = arith.shrui %268, %269 : vector<8x128xi32>
      %271 = tpu.bitcast %270 : vector<8x128xi32> -> vector<8x128xi32>
      %272 = arith.addi %267, %271 : vector<8x128xi32>
      %273 = vector.broadcast %19 : i32 to vector<8x128xi32>
      %274 = arith.andi %50, %273 : vector<8x128xi32>
      %275 = arith.addi %272, %274 : vector<8x128xi32>
      %276 = vector.broadcast %12 : i32 to vector<8x128xi32>
      %277 = arith.muli %58, %276 : vector<8x128xi32>
      %278 = vector.broadcast %14 : i32 to vector<8x128xi32>
      %279 = arith.muli %58, %278 : vector<8x128xi32>
      %280 = vector.broadcast %12 : i32 to vector<8x128xi32>
      %281 = arith.muli %62, %280 : vector<8x128xi32>
      %282 = vector.broadcast %14 : i32 to vector<8x128xi32>
      %283 = arith.muli %62, %282 : vector<8x128xi32>
      %284 = tpu.bitcast %277 : vector<8x128xi32> -> vector<8x128xi32>
      %c16_i32_80 = arith.constant 16 : i32
      %285 = vector.broadcast %c16_i32_80 : i32 to vector<8x128xi32>
      %286 = arith.shrui %284, %285 : vector<8x128xi32>
      %287 = tpu.bitcast %286 : vector<8x128xi32> -> vector<8x128xi32>
      %c65535_i32_81 = arith.constant 65535 : i32
      %288 = vector.broadcast %c65535_i32_81 : i32 to vector<8x128xi32>
      %289 = arith.andi %279, %288 : vector<8x128xi32>
      %290 = arith.addi %287, %289 : vector<8x128xi32>
      %c65535_i32_82 = arith.constant 65535 : i32
      %291 = vector.broadcast %c65535_i32_82 : i32 to vector<8x128xi32>
      %292 = arith.andi %281, %291 : vector<8x128xi32>
      %293 = arith.addi %290, %292 : vector<8x128xi32>
      %294 = vector.broadcast %10 : i32 to vector<8x128xi32>
      %295 = arith.muli %48, %294 : vector<8x128xi32>
      %296 = tpu.bitcast %279 : vector<8x128xi32> -> vector<8x128xi32>
      %c16_i32_83 = arith.constant 16 : i32
      %297 = vector.broadcast %c16_i32_83 : i32 to vector<8x128xi32>
      %298 = arith.shrui %296, %297 : vector<8x128xi32>
      %299 = tpu.bitcast %298 : vector<8x128xi32> -> vector<8x128xi32>
      %300 = arith.addi %283, %299 : vector<8x128xi32>
      %301 = tpu.bitcast %281 : vector<8x128xi32> -> vector<8x128xi32>
      %c16_i32_84 = arith.constant 16 : i32
      %302 = vector.broadcast %c16_i32_84 : i32 to vector<8x128xi32>
      %303 = arith.shrui %301, %302 : vector<8x128xi32>
      %304 = tpu.bitcast %303 : vector<8x128xi32> -> vector<8x128xi32>
      %305 = arith.addi %300, %304 : vector<8x128xi32>
      %306 = tpu.bitcast %293 : vector<8x128xi32> -> vector<8x128xi32>
      %c16_i32_85 = arith.constant 16 : i32
      %307 = vector.broadcast %c16_i32_85 : i32 to vector<8x128xi32>
      %308 = arith.shrui %306, %307 : vector<8x128xi32>
      %309 = tpu.bitcast %308 : vector<8x128xi32> -> vector<8x128xi32>
      %310 = arith.addi %305, %309 : vector<8x128xi32>
      %311 = arith.addi %257, %295 : vector<8x128xi32>
      %312 = arith.addi %275, %310 : vector<8x128xi32>
      %313 = tpu.bitcast %311 : vector<8x128xi32> -> vector<8x128xi32>
      %314 = tpu.bitcast %257 : vector<8x128xi32> -> vector<8x128xi32>
      %315 = arith.cmpi ult, %313, %314 : vector<8x128xi32>
      %c1_i32_86 = arith.constant 1 : i32
      %c0_i32_87 = arith.constant 0 : i32
      %316 = vector.broadcast %c1_i32_86 : i32 to vector<8x128xi32>
      %317 = vector.broadcast %c0_i32_87 : i32 to vector<8x128xi32>
      %318 = arith.select %315, %316, %317 : vector<8x128xi1>, vector<8x128xi32>
      %319 = arith.addi %312, %318 : vector<8x128xi32>
      %320 = arith.addi %219, %319 : vector<8x128xi32>
      %c31_i32_88 = arith.constant 31 : i32
      %321 = vector.broadcast %c31_i32_88 : i32 to vector<8x128xi32>
      %322 = arith.shrsi %319, %321 : vector<8x128xi32>
      %323 = arith.addi %237, %322 : vector<8x128xi32>
      %324 = tpu.bitcast %320 : vector<8x128xi32> -> vector<8x128xi32>
      %325 = tpu.bitcast %219 : vector<8x128xi32> -> vector<8x128xi32>
      %326 = arith.cmpi ult, %324, %325 : vector<8x128xi32>
      %c1_i32_89 = arith.constant 1 : i32
      %c0_i32_90 = arith.constant 0 : i32
      %327 = vector.broadcast %c1_i32_89 : i32 to vector<8x128xi32>
      %328 = vector.broadcast %c0_i32_90 : i32 to vector<8x128xi32>
      %329 = arith.select %326, %327, %328 : vector<8x128xi1>, vector<8x128xi32>
      %330 = arith.addi %323, %329 : vector<8x128xi32>
      %c11_i32_91 = arith.constant 11 : i32
      %331 = vector.broadcast %c11_i32_91 : i32 to vector<8x128xi32>
      %332 = arith.shrsi %330, %331 : vector<8x128xi32>
      %c1_92 = arith.constant 1 : index
      %333 = arith.index_cast %44 : i32 to index
      %c0_93 = arith.constant 0 : index
      %334 = vector.load %arg5[%c1_92, %333, %c0_93] : memref<4x16x128xi32, #tpu.memory_space<vmem>>, vector<1x8x128xi32>
      %335 = vector.shape_cast %334 : vector<1x8x128xi32> to vector<8x128xi32>
      %336 = vector.shape_cast %332 : vector<8x128xi32> to vector<1x8x128xi32>
      tpu.vector_store %arg5[%c1_92, %333, %c0_93], %336 {strides = array<i32>} : memref<4x16x128xi32, #tpu.memory_space<vmem>>, vector<1x8x128xi32>,
      %337 = vector.broadcast %22 : i32 to vector<8x128xi32>
      %338 = arith.muli %52, %337 : vector<8x128xi32>
      %339 = vector.broadcast %24 : i32 to vector<8x128xi32>
      %340 = arith.muli %52, %339 : vector<8x128xi32>
      %341 = vector.broadcast %22 : i32 to vector<8x128xi32>
      %342 = arith.muli %56, %341 : vector<8x128xi32>
      %343 = vector.broadcast %24 : i32 to vector<8x128xi32>
      %344 = arith.muli %56, %343 : vector<8x128xi32>
      %345 = tpu.bitcast %338 : vector<8x128xi32> -> vector<8x128xi32>
      %c16_i32_94 = arith.constant 16 : i32
      %346 = vector.broadcast %c16_i32_94 : i32 to vector<8x128xi32>
      %347 = arith.shrui %345, %346 : vector<8x128xi32>
      %348 = tpu.bitcast %347 : vector<8x128xi32> -> vector<8x128xi32>
      %c65535_i32_95 = arith.constant 65535 : i32
      %349 = vector.broadcast %c65535_i32_95 : i32 to vector<8x128xi32>
      %350 = arith.andi %340, %349 : vector<8x128xi32>
      %351 = arith.addi %348, %350 : vector<8x128xi32>
      %c65535_i32_96 = arith.constant 65535 : i32
      %352 = vector.broadcast %c65535_i32_96 : i32 to vector<8x128xi32>
      %353 = arith.andi %342, %352 : vector<8x128xi32>
      %354 = arith.addi %351, %353 : vector<8x128xi32>
      %355 = vector.broadcast %20 : i32 to vector<8x128xi32>
      %356 = arith.muli %46, %355 : vector<8x128xi32>
      %357 = tpu.bitcast %340 : vector<8x128xi32> -> vector<8x128xi32>
      %c16_i32_97 = arith.constant 16 : i32
      %358 = vector.broadcast %c16_i32_97 : i32 to vector<8x128xi32>
      %359 = arith.shrui %357, %358 : vector<8x128xi32>
      %360 = tpu.bitcast %359 : vector<8x128xi32> -> vector<8x128xi32>
      %361 = arith.addi %344, %360 : vector<8x128xi32>
      %362 = tpu.bitcast %342 : vector<8x128xi32> -> vector<8x128xi32>
      %c16_i32_98 = arith.constant 16 : i32
      %363 = vector.broadcast %c16_i32_98 : i32 to vector<8x128xi32>
      %364 = arith.shrui %362, %363 : vector<8x128xi32>
      %365 = tpu.bitcast %364 : vector<8x128xi32> -> vector<8x128xi32>
      %366 = arith.addi %361, %365 : vector<8x128xi32>
      %367 = tpu.bitcast %354 : vector<8x128xi32> -> vector<8x128xi32>
      %c16_i32_99 = arith.constant 16 : i32
      %368 = vector.broadcast %c16_i32_99 : i32 to vector<8x128xi32>
      %369 = arith.shrui %367, %368 : vector<8x128xi32>
      %370 = tpu.bitcast %369 : vector<8x128xi32> -> vector<8x128xi32>
      %371 = arith.addi %366, %370 : vector<8x128xi32>
      %372 = vector.broadcast %28 : i32 to vector<8x128xi32>
      %373 = arith.andi %50, %372 : vector<8x128xi32>
      %374 = arith.addi %371, %373 : vector<8x128xi32>
      %375 = vector.broadcast %25 : i32 to vector<8x128xi32>
      %376 = arith.muli %52, %375 : vector<8x128xi32>
      %377 = vector.broadcast %27 : i32 to vector<8x128xi32>
      %378 = arith.muli %52, %377 : vector<8x128xi32>
      %379 = vector.broadcast %25 : i32 to vector<8x128xi32>
      %380 = arith.muli %56, %379 : vector<8x128xi32>
      %381 = vector.broadcast %27 : i32 to vector<8x128xi32>
      %382 = arith.muli %56, %381 : vector<8x128xi32>
      %383 = tpu.bitcast %376 : vector<8x128xi32> -> vector<8x128xi32>
      %c16_i32_100 = arith.constant 16 : i32
      %384 = vector.broadcast %c16_i32_100 : i32 to vector<8x128xi32>
      %385 = arith.shrui %383, %384 : vector<8x128xi32>
      %386 = tpu.bitcast %385 : vector<8x128xi32> -> vector<8x128xi32>
      %c65535_i32_101 = arith.constant 65535 : i32
      %387 = vector.broadcast %c65535_i32_101 : i32 to vector<8x128xi32>
      %388 = arith.andi %378, %387 : vector<8x128xi32>
      %389 = arith.addi %386, %388 : vector<8x128xi32>
      %c65535_i32_102 = arith.constant 65535 : i32
      %390 = vector.broadcast %c65535_i32_102 : i32 to vector<8x128xi32>
      %391 = arith.andi %380, %390 : vector<8x128xi32>
      %392 = arith.addi %389, %391 : vector<8x128xi32>
      %393 = vector.broadcast %21 : i32 to vector<8x128xi32>
      %394 = arith.muli %46, %393 : vector<8x128xi32>
      %395 = tpu.bitcast %378 : vector<8x128xi32> -> vector<8x128xi32>
      %c16_i32_103 = arith.constant 16 : i32
      %396 = vector.broadcast %c16_i32_103 : i32 to vector<8x128xi32>
      %397 = arith.shrui %395, %396 : vector<8x128xi32>
      %398 = tpu.bitcast %397 : vector<8x128xi32> -> vector<8x128xi32>
      %399 = arith.addi %382, %398 : vector<8x128xi32>
      %400 = tpu.bitcast %380 : vector<8x128xi32> -> vector<8x128xi32>
      %c16_i32_104 = arith.constant 16 : i32
      %401 = vector.broadcast %c16_i32_104 : i32 to vector<8x128xi32>
      %402 = arith.shrui %400, %401 : vector<8x128xi32>
      %403 = tpu.bitcast %402 : vector<8x128xi32> -> vector<8x128xi32>
      %404 = arith.addi %399, %403 : vector<8x128xi32>
      %405 = tpu.bitcast %392 : vector<8x128xi32> -> vector<8x128xi32>
      %c16_i32_105 = arith.constant 16 : i32
      %406 = vector.broadcast %c16_i32_105 : i32 to vector<8x128xi32>
      %407 = arith.shrui %405, %406 : vector<8x128xi32>
      %408 = tpu.bitcast %407 : vector<8x128xi32> -> vector<8x128xi32>
      %409 = arith.addi %404, %408 : vector<8x128xi32>
      %410 = vector.broadcast %29 : i32 to vector<8x128xi32>
      %411 = arith.andi %50, %410 : vector<8x128xi32>
      %412 = arith.addi %409, %411 : vector<8x128xi32>
      %413 = vector.broadcast %22 : i32 to vector<8x128xi32>
      %414 = arith.muli %58, %413 : vector<8x128xi32>
      %415 = vector.broadcast %24 : i32 to vector<8x128xi32>
      %416 = arith.muli %58, %415 : vector<8x128xi32>
      %417 = vector.broadcast %22 : i32 to vector<8x128xi32>
      %418 = arith.muli %62, %417 : vector<8x128xi32>
      %419 = vector.broadcast %24 : i32 to vector<8x128xi32>
      %420 = arith.muli %62, %419 : vector<8x128xi32>
      %421 = tpu.bitcast %414 : vector<8x128xi32> -> vector<8x128xi32>
      %c16_i32_106 = arith.constant 16 : i32
      %422 = vector.broadcast %c16_i32_106 : i32 to vector<8x128xi32>
      %423 = arith.shrui %421, %422 : vector<8x128xi32>
      %424 = tpu.bitcast %423 : vector<8x128xi32> -> vector<8x128xi32>
      %c65535_i32_107 = arith.constant 65535 : i32
      %425 = vector.broadcast %c65535_i32_107 : i32 to vector<8x128xi32>
      %426 = arith.andi %416, %425 : vector<8x128xi32>
      %427 = arith.addi %424, %426 : vector<8x128xi32>
      %c65535_i32_108 = arith.constant 65535 : i32
      %428 = vector.broadcast %c65535_i32_108 : i32 to vector<8x128xi32>
      %429 = arith.andi %418, %428 : vector<8x128xi32>
      %430 = arith.addi %427, %429 : vector<8x128xi32>
      %431 = vector.broadcast %20 : i32 to vector<8x128xi32>
      %432 = arith.muli %48, %431 : vector<8x128xi32>
      %433 = tpu.bitcast %416 : vector<8x128xi32> -> vector<8x128xi32>
      %c16_i32_109 = arith.constant 16 : i32
      %434 = vector.broadcast %c16_i32_109 : i32 to vector<8x128xi32>
      %435 = arith.shrui %433, %434 : vector<8x128xi32>
      %436 = tpu.bitcast %435 : vector<8x128xi32> -> vector<8x128xi32>
      %437 = arith.addi %420, %436 : vector<8x128xi32>
      %438 = tpu.bitcast %418 : vector<8x128xi32> -> vector<8x128xi32>
      %c16_i32_110 = arith.constant 16 : i32
      %439 = vector.broadcast %c16_i32_110 : i32 to vector<8x128xi32>
      %440 = arith.shrui %438, %439 : vector<8x128xi32>
      %441 = tpu.bitcast %440 : vector<8x128xi32> -> vector<8x128xi32>
      %442 = arith.addi %437, %441 : vector<8x128xi32>
      %443 = tpu.bitcast %430 : vector<8x128xi32> -> vector<8x128xi32>
      %c16_i32_111 = arith.constant 16 : i32
      %444 = vector.broadcast %c16_i32_111 : i32 to vector<8x128xi32>
      %445 = arith.shrui %443, %444 : vector<8x128xi32>
      %446 = tpu.bitcast %445 : vector<8x128xi32> -> vector<8x128xi32>
      %447 = arith.addi %442, %446 : vector<8x128xi32>
      %448 = arith.addi %394, %432 : vector<8x128xi32>
      %449 = arith.addi %412, %447 : vector<8x128xi32>
      %450 = tpu.bitcast %448 : vector<8x128xi32> -> vector<8x128xi32>
      %451 = tpu.bitcast %394 : vector<8x128xi32> -> vector<8x128xi32>
      %452 = arith.cmpi ult, %450, %451 : vector<8x128xi32>
      %c1_i32_112 = arith.constant 1 : i32
      %c0_i32_113 = arith.constant 0 : i32
      %453 = vector.broadcast %c1_i32_112 : i32 to vector<8x128xi32>
      %454 = vector.broadcast %c0_i32_113 : i32 to vector<8x128xi32>
      %455 = arith.select %452, %453, %454 : vector<8x128xi1>, vector<8x128xi32>
      %456 = arith.addi %449, %455 : vector<8x128xi32>
      %457 = arith.addi %356, %456 : vector<8x128xi32>
      %c31_i32_114 = arith.constant 31 : i32
      %458 = vector.broadcast %c31_i32_114 : i32 to vector<8x128xi32>
      %459 = arith.shrsi %456, %458 : vector<8x128xi32>
      %460 = arith.addi %374, %459 : vector<8x128xi32>
      %461 = tpu.bitcast %457 : vector<8x128xi32> -> vector<8x128xi32>
      %462 = tpu.bitcast %356 : vector<8x128xi32> -> vector<8x128xi32>
      %463 = arith.cmpi ult, %461, %462 : vector<8x128xi32>
      %c1_i32_115 = arith.constant 1 : i32
      %c0_i32_116 = arith.constant 0 : i32
      %464 = vector.broadcast %c1_i32_115 : i32 to vector<8x128xi32>
      %465 = vector.broadcast %c0_i32_116 : i32 to vector<8x128xi32>
      %466 = arith.select %463, %464, %465 : vector<8x128xi1>, vector<8x128xi32>
      %467 = arith.addi %460, %466 : vector<8x128xi32>
      %c11_i32_117 = arith.constant 11 : i32
      %468 = vector.broadcast %c11_i32_117 : i32 to vector<8x128xi32>
      %469 = arith.shrsi %467, %468 : vector<8x128xi32>
      %c2_118 = arith.constant 2 : index
      %470 = arith.index_cast %44 : i32 to index
      %c0_119 = arith.constant 0 : index
      %471 = vector.load %arg5[%c2_118, %470, %c0_119] : memref<4x16x128xi32, #tpu.memory_space<vmem>>, vector<1x8x128xi32>
      %472 = vector.shape_cast %471 : vector<1x8x128xi32> to vector<8x128xi32>
      %473 = vector.shape_cast %469 : vector<8x128xi32> to vector<1x8x128xi32>
      tpu.vector_store %arg5[%c2_118, %470, %c0_119], %473 {strides = array<i32>} : memref<4x16x128xi32, #tpu.memory_space<vmem>>, vector<1x8x128xi32>,
      %474 = vector.broadcast %32 : i32 to vector<8x128xi32>
      %475 = arith.muli %52, %474 : vector<8x128xi32>
      %476 = vector.broadcast %34 : i32 to vector<8x128xi32>
      %477 = arith.muli %52, %476 : vector<8x128xi32>
      %478 = vector.broadcast %32 : i32 to vector<8x128xi32>
      %479 = arith.muli %56, %478 : vector<8x128xi32>
      %480 = vector.broadcast %34 : i32 to vector<8x128xi32>
      %481 = arith.muli %56, %480 : vector<8x128xi32>
      %482 = tpu.bitcast %475 : vector<8x128xi32> -> vector<8x128xi32>
      %c16_i32_120 = arith.constant 16 : i32
      %483 = vector.broadcast %c16_i32_120 : i32 to vector<8x128xi32>
      %484 = arith.shrui %482, %483 : vector<8x128xi32>
      %485 = tpu.bitcast %484 : vector<8x128xi32> -> vector<8x128xi32>
      %c65535_i32_121 = arith.constant 65535 : i32
      %486 = vector.broadcast %c65535_i32_121 : i32 to vector<8x128xi32>
      %487 = arith.andi %477, %486 : vector<8x128xi32>
      %488 = arith.addi %485, %487 : vector<8x128xi32>
      %c65535_i32_122 = arith.constant 65535 : i32
      %489 = vector.broadcast %c65535_i32_122 : i32 to vector<8x128xi32>
      %490 = arith.andi %479, %489 : vector<8x128xi32>
      %491 = arith.addi %488, %490 : vector<8x128xi32>
      %492 = vector.broadcast %30 : i32 to vector<8x128xi32>
      %493 = arith.muli %46, %492 : vector<8x128xi32>
      %494 = tpu.bitcast %477 : vector<8x128xi32> -> vector<8x128xi32>
      %c16_i32_123 = arith.constant 16 : i32
      %495 = vector.broadcast %c16_i32_123 : i32 to vector<8x128xi32>
      %496 = arith.shrui %494, %495 : vector<8x128xi32>
      %497 = tpu.bitcast %496 : vector<8x128xi32> -> vector<8x128xi32>
      %498 = arith.addi %481, %497 : vector<8x128xi32>
      %499 = tpu.bitcast %479 : vector<8x128xi32> -> vector<8x128xi32>
      %c16_i32_124 = arith.constant 16 : i32
      %500 = vector.broadcast %c16_i32_124 : i32 to vector<8x128xi32>
      %501 = arith.shrui %499, %500 : vector<8x128xi32>
      %502 = tpu.bitcast %501 : vector<8x128xi32> -> vector<8x128xi32>
      %503 = arith.addi %498, %502 : vector<8x128xi32>
      %504 = tpu.bitcast %491 : vector<8x128xi32> -> vector<8x128xi32>
      %c16_i32_125 = arith.constant 16 : i32
      %505 = vector.broadcast %c16_i32_125 : i32 to vector<8x128xi32>
      %506 = arith.shrui %504, %505 : vector<8x128xi32>
      %507 = tpu.bitcast %506 : vector<8x128xi32> -> vector<8x128xi32>
      %508 = arith.addi %503, %507 : vector<8x128xi32>
      %509 = vector.broadcast %38 : i32 to vector<8x128xi32>
      %510 = arith.andi %50, %509 : vector<8x128xi32>
      %511 = arith.addi %508, %510 : vector<8x128xi32>
      %512 = vector.broadcast %35 : i32 to vector<8x128xi32>
      %513 = arith.muli %52, %512 : vector<8x128xi32>
      %514 = vector.broadcast %37 : i32 to vector<8x128xi32>
      %515 = arith.muli %52, %514 : vector<8x128xi32>
      %516 = vector.broadcast %35 : i32 to vector<8x128xi32>
      %517 = arith.muli %56, %516 : vector<8x128xi32>
      %518 = vector.broadcast %37 : i32 to vector<8x128xi32>
      %519 = arith.muli %56, %518 : vector<8x128xi32>
      %520 = tpu.bitcast %513 : vector<8x128xi32> -> vector<8x128xi32>
      %c16_i32_126 = arith.constant 16 : i32
      %521 = vector.broadcast %c16_i32_126 : i32 to vector<8x128xi32>
      %522 = arith.shrui %520, %521 : vector<8x128xi32>
      %523 = tpu.bitcast %522 : vector<8x128xi32> -> vector<8x128xi32>
      %c65535_i32_127 = arith.constant 65535 : i32
      %524 = vector.broadcast %c65535_i32_127 : i32 to vector<8x128xi32>
      %525 = arith.andi %515, %524 : vector<8x128xi32>
      %526 = arith.addi %523, %525 : vector<8x128xi32>
      %c65535_i32_128 = arith.constant 65535 : i32
      %527 = vector.broadcast %c65535_i32_128 : i32 to vector<8x128xi32>
      %528 = arith.andi %517, %527 : vector<8x128xi32>
      %529 = arith.addi %526, %528 : vector<8x128xi32>
      %530 = vector.broadcast %31 : i32 to vector<8x128xi32>
      %531 = arith.muli %46, %530 : vector<8x128xi32>
      %532 = tpu.bitcast %515 : vector<8x128xi32> -> vector<8x128xi32>
      %c16_i32_129 = arith.constant 16 : i32
      %533 = vector.broadcast %c16_i32_129 : i32 to vector<8x128xi32>
      %534 = arith.shrui %532, %533 : vector<8x128xi32>
      %535 = tpu.bitcast %534 : vector<8x128xi32> -> vector<8x128xi32>
      %536 = arith.addi %519, %535 : vector<8x128xi32>
      %537 = tpu.bitcast %517 : vector<8x128xi32> -> vector<8x128xi32>
      %c16_i32_130 = arith.constant 16 : i32
      %538 = vector.broadcast %c16_i32_130 : i32 to vector<8x128xi32>
      %539 = arith.shrui %537, %538 : vector<8x128xi32>
      %540 = tpu.bitcast %539 : vector<8x128xi32> -> vector<8x128xi32>
      %541 = arith.addi %536, %540 : vector<8x128xi32>
      %542 = tpu.bitcast %529 : vector<8x128xi32> -> vector<8x128xi32>
      %c16_i32_131 = arith.constant 16 : i32
      %543 = vector.broadcast %c16_i32_131 : i32 to vector<8x128xi32>
      %544 = arith.shrui %542, %543 : vector<8x128xi32>
      %545 = tpu.bitcast %544 : vector<8x128xi32> -> vector<8x128xi32>
      %546 = arith.addi %541, %545 : vector<8x128xi32>
      %547 = vector.broadcast %39 : i32 to vector<8x128xi32>
      %548 = arith.andi %50, %547 : vector<8x128xi32>
      %549 = arith.addi %546, %548 : vector<8x128xi32>
      %550 = vector.broadcast %32 : i32 to vector<8x128xi32>
      %551 = arith.muli %58, %550 : vector<8x128xi32>
      %552 = vector.broadcast %34 : i32 to vector<8x128xi32>
      %553 = arith.muli %58, %552 : vector<8x128xi32>
      %554 = vector.broadcast %32 : i32 to vector<8x128xi32>
      %555 = arith.muli %62, %554 : vector<8x128xi32>
      %556 = vector.broadcast %34 : i32 to vector<8x128xi32>
      %557 = arith.muli %62, %556 : vector<8x128xi32>
      %558 = tpu.bitcast %551 : vector<8x128xi32> -> vector<8x128xi32>
      %c16_i32_132 = arith.constant 16 : i32
      %559 = vector.broadcast %c16_i32_132 : i32 to vector<8x128xi32>
      %560 = arith.shrui %558, %559 : vector<8x128xi32>
      %561 = tpu.bitcast %560 : vector<8x128xi32> -> vector<8x128xi32>
      %c65535_i32_133 = arith.constant 65535 : i32
      %562 = vector.broadcast %c65535_i32_133 : i32 to vector<8x128xi32>
      %563 = arith.andi %553, %562 : vector<8x128xi32>
      %564 = arith.addi %561, %563 : vector<8x128xi32>
      %c65535_i32_134 = arith.constant 65535 : i32
      %565 = vector.broadcast %c65535_i32_134 : i32 to vector<8x128xi32>
      %566 = arith.andi %555, %565 : vector<8x128xi32>
      %567 = arith.addi %564, %566 : vector<8x128xi32>
      %568 = vector.broadcast %30 : i32 to vector<8x128xi32>
      %569 = arith.muli %48, %568 : vector<8x128xi32>
      %570 = tpu.bitcast %553 : vector<8x128xi32> -> vector<8x128xi32>
      %c16_i32_135 = arith.constant 16 : i32
      %571 = vector.broadcast %c16_i32_135 : i32 to vector<8x128xi32>
      %572 = arith.shrui %570, %571 : vector<8x128xi32>
      %573 = tpu.bitcast %572 : vector<8x128xi32> -> vector<8x128xi32>
      %574 = arith.addi %557, %573 : vector<8x128xi32>
      %575 = tpu.bitcast %555 : vector<8x128xi32> -> vector<8x128xi32>
      %c16_i32_136 = arith.constant 16 : i32
      %576 = vector.broadcast %c16_i32_136 : i32 to vector<8x128xi32>
      %577 = arith.shrui %575, %576 : vector<8x128xi32>
      %578 = tpu.bitcast %577 : vector<8x128xi32> -> vector<8x128xi32>
      %579 = arith.addi %574, %578 : vector<8x128xi32>
      %580 = tpu.bitcast %567 : vector<8x128xi32> -> vector<8x128xi32>
      %c16_i32_137 = arith.constant 16 : i32
      %581 = vector.broadcast %c16_i32_137 : i32 to vector<8x128xi32>
      %582 = arith.shrui %580, %581 : vector<8x128xi32>
      %583 = tpu.bitcast %582 : vector<8x128xi32> -> vector<8x128xi32>
      %584 = arith.addi %579, %583 : vector<8x128xi32>
      %585 = arith.addi %531, %569 : vector<8x128xi32>
      %586 = arith.addi %549, %584 : vector<8x128xi32>
      %587 = tpu.bitcast %585 : vector<8x128xi32> -> vector<8x128xi32>
      %588 = tpu.bitcast %531 : vector<8x128xi32> -> vector<8x128xi32>
      %589 = arith.cmpi ult, %587, %588 : vector<8x128xi32>
      %c1_i32_138 = arith.constant 1 : i32
      %c0_i32_139 = arith.constant 0 : i32
      %590 = vector.broadcast %c1_i32_138 : i32 to vector<8x128xi32>
      %591 = vector.broadcast %c0_i32_139 : i32 to vector<8x128xi32>
      %592 = arith.select %589, %590, %591 : vector<8x128xi1>, vector<8x128xi32>
      %593 = arith.addi %586, %592 : vector<8x128xi32>
      %594 = arith.addi %493, %593 : vector<8x128xi32>
      %c31_i32_140 = arith.constant 31 : i32
      %595 = vector.broadcast %c31_i32_140 : i32 to vector<8x128xi32>
      %596 = arith.shrsi %593, %595 : vector<8x128xi32>
      %597 = arith.addi %511, %596 : vector<8x128xi32>
      %598 = tpu.bitcast %594 : vector<8x128xi32> -> vector<8x128xi32>
      %599 = tpu.bitcast %493 : vector<8x128xi32> -> vector<8x128xi32>
      %600 = arith.cmpi ult, %598, %599 : vector<8x128xi32>
      %c1_i32_141 = arith.constant 1 : i32
      %c0_i32_142 = arith.constant 0 : i32
      %601 = vector.broadcast %c1_i32_141 : i32 to vector<8x128xi32>
      %602 = vector.broadcast %c0_i32_142 : i32 to vector<8x128xi32>
      %603 = arith.select %600, %601, %602 : vector<8x128xi1>, vector<8x128xi32>
      %604 = arith.addi %597, %603 : vector<8x128xi32>
      %c11_i32_143 = arith.constant 11 : i32
      %605 = vector.broadcast %c11_i32_143 : i32 to vector<8x128xi32>
      %606 = arith.shrsi %604, %605 : vector<8x128xi32>
      %c3_144 = arith.constant 3 : index
      %607 = arith.index_cast %44 : i32 to index
      %c0_145 = arith.constant 0 : index
      %608 = vector.load %arg5[%c3_144, %607, %c0_145] : memref<4x16x128xi32, #tpu.memory_space<vmem>>, vector<1x8x128xi32>
      %609 = vector.shape_cast %608 : vector<1x8x128xi32> to vector<8x128xi32>
      %610 = vector.shape_cast %606 : vector<8x128xi32> to vector<1x8x128xi32>
      tpu.vector_store %arg5[%c3_144, %607, %c0_145], %610 {strides = array<i32>} : memref<4x16x128xi32, #tpu.memory_space<vmem>>, vector<1x8x128xi32>,
    }
    %c2_i32_34 = arith.constant 2 : i32
    return
  }
  func.func @transform_0(%arg0: i32, %arg1: memref<4xi32, #tpu.memory_space<smem>>, %arg2: memref<4xi32, #tpu.memory_space<smem>>) -> (i32, i32) {
    %c0_i32 = arith.constant 0 : i32
    %c0_i32_0 = arith.constant 0 : i32
    return %arg0, %c0_i32 : i32, i32
  }
  func.func @transform_1(%arg0: i32, %arg1: memref<4xi32, #tpu.memory_space<smem>>, %arg2: memref<4xi32, #tpu.memory_space<smem>>) -> (i32, i32) {
    %c0_i32 = arith.constant 0 : i32
    %c0_i32_0 = arith.constant 0 : i32
    return %arg0, %c0_i32 : i32, i32
  }
  func.func @transform_2(%arg0: i32, %arg1: memref<4xi32, #tpu.memory_space<smem>>, %arg2: memref<4xi32, #tpu.memory_space<smem>>) -> (i32, i32, i32) {
    %c0_i32 = arith.constant 0 : i32
    %c0_i32_0 = arith.constant 0 : i32
    %c0_i32_1 = arith.constant 0 : i32
    return %c0_i32, %arg0, %c0_i32_0 : i32, i32, i32
  }
}

</mosaic_0001>

<llo_original>
// kernel: tpu_custom_call.1
$region0: #{tpu_custom_call.1}
  #allocation0 [shape = 'u32[]', space=smem, size = 0x4, offset = 0x4, fixed_abs, tag = 'smem constant byte address 0x4 - core index']
  #allocation1 [shape = 'u32[72,128]{1,0:T(1,128)}', space=vmem, size = 0x9000, scoped, tag = 'internal scratch']
  #allocation2 [shape = 's32[1]{0}', space=sflag, size = 0x4, scoped, tag = 'scoped memory for tpu_custom_call.1']
  #allocation3 [shape = 'u8[512]{0}', space=smem, size = 0x200, scoped, tag = 'prefetched SMEM operand 0']
  #allocation4 [shape = 'u8[512]{0}', space=smem, size = 0x200, scoped, tag = 'prefetched SMEM operand 1']
  %s0 = inlined_call_operand.hbm [shape: s32[4], index: 0, kind: input, shape index: {}]
  %s1 = inlined_call_operand.hbm [shape: s32[4], index: 1, kind: input, shape index: {}]
  %s2 = inlined_call_operand.hbm [shape: s32[16,128], index: 2, kind: input, shape index: {}]
  %s3 = inlined_call_operand.hbm [shape: s32[16,128], index: 3, kind: input, shape index: {}]
  %s4 = inlined_call_operand.hbm [shape: s32[4,16,128], index: 4, kind: output, shape index: {}]
  %s5 = sld [smem:[#allocation0]]
  $region33: #{tpu_custom_call.1} parent=0
    _
  %s7 = ssub.s32 1, %s5
  %s8 = scalar_select 0, %s7, %s5
  %s10 = sshll.u32 %s0, 4
  %s11 = int_to_ptr.hbm [resolvable:$true] %s10
  %13 = dma.hbm_to_smem %s11, 16, [#allocation3], [#allocation2]
  %s15 = sshll.u32 %s1, 4
  %s16 = int_to_ptr.hbm [resolvable:$true] %s15
  %18 = dma.hbm_to_smem %s16, 16, [#allocation4], [#allocation2]
  %20 = dma.done [#allocation2], 32
  %21 = sfence
  $region1: #{tpu_custom_call.1} parent=0
    #allocation5 [shape = 'u8[8192]{0}', space=vmem, size = 0x2000, scoped, tag = 'input window, operand 2, single buffered']
    #allocation6 [shape = 's32[1]{0}', space=sflag, size = 0x4, scoped, tag = 'scoped memory for tpu_custom_call.1']
    #allocation7 [shape = 's32[1]{0}', space=sflag, size = 0x4, scoped, tag = 'scoped memory for tpu_custom_call.1']
    #allocation8 [shape = 'u8[8192]{0}', space=vmem, size = 0x2000, scoped, tag = 'input window, operand 3, single buffered']
    #allocation9 [shape = 's32[1]{0}', space=sflag, size = 0x4, scoped, tag = 'scoped memory for tpu_custom_call.1']
    #allocation10 [shape = 'u8[32768]{0}', space=vmem, size = 0x8000, scoped, tag = 'output window, operand 0, single buffered']
    %22 = vsyncpa [#allocation6], 0
    %23 = vsyncpa [#allocation9], 0
    %24 = vsyncpa [#allocation7], 0
    // Predicated region
    $region2: #{tpu_custom_call.1} parent=1 // pred_check
      _
    $region3: #{tpu_custom_call.1} parent=1 // pred_check_branch
      %26 = sbr.rel (0) target = $region5
    $region4: #{tpu_custom_call.1} parent=1 // pred_region
      %28 = vsyncadd [#allocation6], 0
      %s29 = sshll.u32 %s2, 4
      %s30 = int_to_ptr.hbm [resolvable:$true] %s29
      %s31 = sshll.u32 [#allocation5], 4
      %s32 = int_to_ptr.vmem [resolvable:$true] %s31
      %37 = dma.hbm_to_vmem [thread:$0]  %s30, 256, %s32, [#allocation6], 128, 128, 8
    $region5: #{tpu_custom_call.1} parent=1 // pred_fallthru
      _
    // Predicated region
    $region6: #{tpu_custom_call.1} parent=1 // pred_check
      _
    $region7: #{tpu_custom_call.1} parent=1 // pred_check_branch
      %39 = sbr.rel (0) target = $region9
    $region8: #{tpu_custom_call.1} parent=1 // pred_region
      %41 = vsyncadd [#allocation9], 0
      %s42 = sshll.u32 %s3, 4
      %s43 = int_to_ptr.hbm [resolvable:$true] %s42
      %s44 = sshll.u32 [#allocation8], 4
      %s45 = int_to_ptr.vmem [resolvable:$true] %s44
      %50 = dma.hbm_to_vmem [thread:$0]  %s43, 256, %s45, [#allocation9], 128, 128, 8
    $region9: #{tpu_custom_call.1} parent=1 // pred_fallthru
      _
    // Predicated region
    $region10: #{tpu_custom_call.1} parent=1 // pred_check
      _
    $region11: #{tpu_custom_call.1} parent=1 // pred_check_branch
      %52 = sbr.rel (0) target = $region13
    $region12: #{tpu_custom_call.1} parent=1 // pred_region
      %54 = dma.done [#allocation6], 256
    $region13: #{tpu_custom_call.1} parent=1 // pred_fallthru
      _
    // Predicated region
    $region14: #{tpu_custom_call.1} parent=1 // pred_check
      _
    $region15: #{tpu_custom_call.1} parent=1 // pred_check_branch
      %56 = sbr.rel (0) target = $region17
    $region16: #{tpu_custom_call.1} parent=1 // pred_region
      %58 = dma.done [#allocation9], 256
    $region17: #{tpu_custom_call.1} parent=1 // pred_fallthru
      _
    %s59 = sld [smem:[#allocation3]]
    %s60 = sld [smem:[#allocation4]]
    %s61 = sand.u32 %s59, 65535
    %s62 = sshra.s32 %s59, 16
    %s63 = sand.u32 %s62, 65535
    %s64 = sand.u32 %s60, 65535
    %s65 = sshra.s32 %s60, 16
    %s66 = sand.u32 %s65, 65535
    %s67 = ssub.s32 0, %s59
    %s68 = ssub.s32 0, %s60
    %s69 = sld [smem:[#allocation3 + $0x1]]
    %s70 = sld [smem:[#allocation4 + $0x1]]
    %s71 = sand.u32 %s69, 65535
    %s72 = sshra.s32 %s69, 16
    %s73 = sand.u32 %s72, 65535
    %s74 = sand.u32 %s70, 65535
    %s75 = sshra.s32 %s70, 16
    %s76 = sand.u32 %s75, 65535
    %s77 = ssub.s32 0, %s69
    %s78 = ssub.s32 0, %s70
    %s79 = sld [smem:[#allocation3 + $0x2]]
    %s80 = sld [smem:[#allocation4 + $0x2]]
    %s81 = sand.u32 %s79, 65535
    %s82 = sshra.s32 %s79, 16
    %s83 = sand.u32 %s82, 65535
    %s84 = sand.u32 %s80, 65535
    %s85 = sshra.s32 %s80, 16
    %s86 = sand.u32 %s85, 65535
    %s87 = ssub.s32 0, %s79
    %s88 = ssub.s32 0, %s80
    %s89 = sld [smem:[#allocation3 + $0x3]]
    %s90 = sld [smem:[#allocation4 + $0x3]]
    %s91 = sand.u32 %s89, 65535
    %s92 = sshra.s32 %s89, 16
    %s93 = sand.u32 %s92, 65535
    %s94 = sand.u32 %s90, 65535
    %s95 = sshra.s32 %s90, 16
    %s96 = sand.u32 %s95, 65535
    %s97 = ssub.s32 0, %s89
    %s98 = ssub.s32 0, %s90
    loop: start=0, step=1, limit=2
    $region18: #{tpu_custom_call.1} parent=1 // loop_pre_header
      _
    $region19: #{tpu_custom_call.1} parent=1 // loop_header
      %s100 = sphi 0, %s104
      %p101 = scmp.ge.s32.totalorder %s100, 2
    $region20: #{tpu_custom_call.1} parent=1 // loop_header_branch
      %103 = sbr.rel (%p101) target = $region24
    $region21: #{tpu_custom_call.1} parent=1 // loop_body
      %s105 = smul.u32 %s100, 8
      %s106 = scalar_lea.vmem [#allocation5], %s105
      %v107 = vld [vmem:[%s106] sm:$0xff]
      %s108 = scalar_lea.vmem [#allocation8], %s105
      %v109 = vld [vmem:[%s108] sm:$0xff]
      %v110 = vshra.s32 %v107, 31
      %v111 = vand.u32 %v107, 65535
      %v112 = vshrl.u32 %v107, 16
      %v113 = vand.u32 %v109, 65535
      %v114 = vshrl.u32 %v109, 16
      %v115 = vstv %s61
      %v116 = vmul.u32 %v111, %v115
      %v117 = vstv %s63
      %v118 = vmul.u32 %v111, %v117
      %v119 = vmul.u32 %v112, %v115
      %v120 = vmul.u32 %v112, %v117
      %v121 = vshrl.u32 %v116, 16
      %v122 = vand.u32 %v118, 65535
      %v123 = vadd.s32 %v121, %v122
      %v124 = vand.u32 %v119, 65535
      %v125 = vadd.s32 %v123, %v124
      %v126 = vstv %s59
      %v127 = vmul.u32 %v107, %v126
      %v128 = vshrl.u32 %v118, 16
      %v129 = vadd.s32 %v120, %v128
      %v130 = vshrl.u32 %v119, 16
      %v131 = vadd.s32 %v129, %v130
      %v132 = vshrl.u32 %v125, 16
      %v133 = vadd.s32 %v131, %v132
      %v134 = vstv %s67
      %v135 = vand.u32 %v110, %v134
      %v136 = vadd.s32 %v133, %v135
      %v137 = vstv %s64
      %v138 = vmul.u32 %v111, %v137
      %v139 = vstv %s66
      %v140 = vmul.u32 %v111, %v139
      %v141 = vmul.u32 %v112, %v137
      %v142 = vmul.u32 %v112, %v139
      %v143 = vshrl.u32 %v138, 16
      %v144 = vand.u32 %v140, 65535
      %v145 = vadd.s32 %v143, %v144
      %v146 = vand.u32 %v141, 65535
      %v147 = vadd.s32 %v145, %v146
      %v148 = vstv %s60
      %v149 = vmul.u32 %v107, %v148
      %v150 = vshrl.u32 %v140, 16
      %v151 = vadd.s32 %v142, %v150
      %v152 = vshrl.u32 %v141, 16
      %v153 = vadd.s32 %v151, %v152
      %v154 = vshrl.u32 %v147, 16
      %v155 = vadd.s32 %v153, %v154
      %v156 = vstv %s68
      %v157 = vand.u32 %v110, %v156
      %v158 = vadd.s32 %v155, %v157
      %v159 = vmul.u32 %v113, %v115
      %v160 = vmul.u32 %v113, %v117
      %v161 = vmul.u32 %v114, %v115
      %v162 = vmul.u32 %v114, %v117
      %v163 = vshrl.u32 %v159, 16
      %v164 = vand.u32 %v160, 65535
      %v165 = vadd.s32 %v163, %v164
      %v166 = vand.u32 %v161, 65535
      %v167 = vadd.s32 %v165, %v166
      %v168 = vmul.u32 %v109, %v126
      %v169 = vshrl.u32 %v160, 16
      %v170 = vadd.s32 %v162, %v169
      %v171 = vshrl.u32 %v161, 16
      %v172 = vadd.s32 %v170, %v171
      %v173 = vshrl.u32 %v167, 16
      %v174 = vadd.s32 %v172, %v173
      %v175 = vadd.s32 %v149, %v168
      %v176 = vadd.s32 %v158, %v174
      %v177 = vadd.s32 %v175, 2147483648
      %v178 = vadd.s32 %v149, 2147483648
      %vm179 = vcmp.lt.s32.totalorder %v177, %v178
      %v180 = vsel %vm179, 1, 0
      %v181 = vadd.s32 %v176, %v180
      %v182 = vadd.s32 %v127, %v181
      %v183 = vshra.s32 %v181, 31
      %v184 = vadd.s32 %v136, %v183
      %v185 = vadd.s32 %v182, 2147483648
      %v186 = vadd.s32 %v127, 2147483648
      %vm187 = vcmp.lt.s32.totalorder %v185, %v186
      %v188 = vsel %vm187, 1, 0
      %v189 = vadd.s32 %v184, %v188
      %v190 = vshra.s32 %v189, 11
      %s191 = scalar_lea.vmem [#allocation10], %s105
      %192 = vst [vmem:[%s191] sm:$0xff] %v190
      %v193 = vstv %s71
      %v194 = vmul.u32 %v111, %v193
      %v195 = vstv %s73
      %v196 = vmul.u32 %v111, %v195
      %v197 = vmul.u32 %v112, %v193
      %v198 = vmul.u32 %v112, %v195
      %v199 = vshrl.u32 %v194, 16
      %v200 = vand.u32 %v196, 65535
      %v201 = vadd.s32 %v199, %v200
      %v202 = vand.u32 %v197, 65535
      %v203 = vadd.s32 %v201, %v202
      %v204 = vstv %s69
      %v205 = vmul.u32 %v107, %v204
      %v206 = vshrl.u32 %v196, 16
      %v207 = vadd.s32 %v198, %v206
      %v208 = vshrl.u32 %v197, 16
      %v209 = vadd.s32 %v207, %v208
      %v210 = vshrl.u32 %v203, 16
      %v211 = vadd.s32 %v209, %v210
      %v212 = vstv %s77
      %v213 = vand.u32 %v110, %v212
      %v214 = vadd.s32 %v211, %v213
      %v215 = vstv %s74
      %v216 = vmul.u32 %v111, %v215
      %v217 = vstv %s76
      %v218 = vmul.u32 %v111, %v217
      %v219 = vmul.u32 %v112, %v215
      %v220 = vmul.u32 %v112, %v217
      %v221 = vshrl.u32 %v216, 16
      %v222 = vand.u32 %v218, 65535
      %v223 = vadd.s32 %v221, %v222
      %v224 = vand.u32 %v219, 65535
      %v225 = vadd.s32 %v223, %v224
      %v226 = vstv %s70
      %v227 = vmul.u32 %v107, %v226
      %v228 = vshrl.u32 %v218, 16
      %v229 = vadd.s32 %v220, %v228
      %v230 = vshrl.u32 %v219, 16
      %v231 = vadd.s32 %v229, %v230
      %v232 = vshrl.u32 %v225, 16
      %v233 = vadd.s32 %v231, %v232
      %v234 = vstv %s78
      %v235 = vand.u32 %v110, %v234
      %v236 = vadd.s32 %v233, %v235
      %v237 = vmul.u32 %v113, %v193
      %v238 = vmul.u32 %v113, %v195
      %v239 = vmul.u32 %v114, %v193
      %v240 = vmul.u32 %v114, %v195
      %v241 = vshrl.u32 %v237, 16
      %v242 = vand.u32 %v238, 65535
      %v243 = vadd.s32 %v241, %v242
      %v244 = vand.u32 %v239, 65535
      %v245 = vadd.s32 %v243, %v244
      %v246 = vmul.u32 %v109, %v204
      %v247 = vshrl.u32 %v238, 16
      %v248 = vadd.s32 %v240, %v247
      %v249 = vshrl.u32 %v239, 16
      %v250 = vadd.s32 %v248, %v249
      %v251 = vshrl.u32 %v245, 16
      %v252 = vadd.s32 %v250, %v251
      %v253 = vadd.s32 %v227, %v246
      %v254 = vadd.s32 %v236, %v252
      %v255 = vadd.s32 %v253, 2147483648
      %v256 = vadd.s32 %v227, 2147483648
      %vm257 = vcmp.lt.s32.totalorder %v255, %v256
      %v258 = vsel %vm257, 1, 0
      %v259 = vadd.s32 %v254, %v258
      %v260 = vadd.s32 %v205, %v259
      %v261 = vshra.s32 %v259, 31
      %v262 = vadd.s32 %v214, %v261
      %v263 = vadd.s32 %v260, 2147483648
      %v264 = vadd.s32 %v205, 2147483648
      %vm265 = vcmp.lt.s32.totalorder %v263, %v264
      %v266 = vsel %vm265, 1, 0
      %v267 = vadd.s32 %v262, %v266
      %v268 = vshra.s32 %v267, 11
      %s269 = sadd.s32 %s105, 16
      %s270 = scalar_lea.vmem [#allocation10], %s269
      %271 = vst [vmem:[%s270] sm:$0xff] %v268
      %v272 = vstv %s81
      %v273 = vmul.u32 %v111, %v272
      %v274 = vstv %s83
      %v275 = vmul.u32 %v111, %v274
      %v276 = vmul.u32 %v112, %v272
      %v277 = vmul.u32 %v112, %v274
      %v278 = vshrl.u32 %v273, 16
      %v279 = vand.u32 %v275, 65535
      %v280 = vadd.s32 %v278, %v279
      %v281 = vand.u32 %v276, 65535
      %v282 = vadd.s32 %v280, %v281
      %v283 = vstv %s79
      %v284 = vmul.u32 %v107, %v283
      %v285 = vshrl.u32 %v275, 16
      %v286 = vadd.s32 %v277, %v285
      %v287 = vshrl.u32 %v276, 16
      %v288 = vadd.s32 %v286, %v287
      %v289 = vshrl.u32 %v282, 16
      %v290 = vadd.s32 %v288, %v289
      %v291 = vstv %s87
      %v292 = vand.u32 %v110, %v291
      %v293 = vadd.s32 %v290, %v292
      %v294 = vstv %s84
      %v295 = vmul.u32 %v111, %v294
      %v296 = vstv %s86
      %v297 = vmul.u32 %v111, %v296
      %v298 = vmul.u32 %v112, %v294
      %v299 = vmul.u32 %v112, %v296
      %v300 = vshrl.u32 %v295, 16
      %v301 = vand.u32 %v297, 65535
      %v302 = vadd.s32 %v300, %v301
      %v303 = vand.u32 %v298, 65535
      %v304 = vadd.s32 %v302, %v303
      %v305 = vstv %s80
      %v306 = vmul.u32 %v107, %v305
      %v307 = vshrl.u32 %v297, 16
      %v308 = vadd.s32 %v299, %v307
      %v309 = vshrl.u32 %v298, 16
      %v310 = vadd.s32 %v308, %v309
      %v311 = vshrl.u32 %v304, 16
      %v312 = vadd.s32 %v310, %v311
      %v313 = vstv %s88
      %v314 = vand.u32 %v110, %v313
      %v315 = vadd.s32 %v312, %v314
      %v316 = vmul.u32 %v113, %v272
      %v317 = vmul.u32 %v113, %v274
      %v318 = vmul.u32 %v114, %v272
      %v319 = vmul.u32 %v114, %v274
      %v320 = vshrl.u32 %v316, 16
      %v321 = vand.u32 %v317, 65535
      %v322 = vadd.s32 %v320, %v321
      %v323 = vand.u32 %v318, 65535
      %v324 = vadd.s32 %v322, %v323
      %v325 = vmul.u32 %v109, %v283
      %v326 = vshrl.u32 %v317, 16
      %v327 = vadd.s32 %v319, %v326
      %v328 = vshrl.u32 %v318, 16
      %v329 = vadd.s32 %v327, %v328
      %v330 = vshrl.u32 %v324, 16
      %v331 = vadd.s32 %v329, %v330
      %v332 = vadd.s32 %v306, %v325
      %v333 = vadd.s32 %v315, %v331
      %v334 = vadd.s32 %v332, 2147483648
      %v335 = vadd.s32 %v306, 2147483648
      %vm336 = vcmp.lt.s32.totalorder %v334, %v335
      %v337 = vsel %vm336, 1, 0
      %v338 = vadd.s32 %v333, %v337
      %v339 = vadd.s32 %v284, %v338
      %v340 = vshra.s32 %v338, 31
      %v341 = vadd.s32 %v293, %v340
      %v342 = vadd.s32 %v339, 2147483648
      %v343 = vadd.s32 %v284, 2147483648
      %vm344 = vcmp.lt.s32.totalorder %v342, %v343
      %v345 = vsel %vm344, 1, 0
      %v346 = vadd.s32 %v341, %v345
      %v347 = vshra.s32 %v346, 11
      %s348 = sadd.s32 %s105, 32
      %s349 = scalar_lea.vmem [#allocation10], %s348
      %350 = vst [vmem:[%s349] sm:$0xff] %v347
      %v351 = vstv %s91
      %v352 = vmul.u32 %v111, %v351
      %v353 = vstv %s93
      %v354 = vmul.u32 %v111, %v353
      %v355 = vmul.u32 %v112, %v351
      %v356 = vmul.u32 %v112, %v353
      %v357 = vshrl.u32 %v352, 16
      %v358 = vand.u32 %v354, 65535
      %v359 = vadd.s32 %v357, %v358
      %v360 = vand.u32 %v355, 65535
      %v361 = vadd.s32 %v359, %v360
      %v362 = vstv %s89
      %v363 = vmul.u32 %v107, %v362
      %v364 = vshrl.u32 %v354, 16
      %v365 = vadd.s32 %v356, %v364
      %v366 = vshrl.u32 %v355, 16
      %v367 = vadd.s32 %v365, %v366
      %v368 = vshrl.u32 %v361, 16
      %v369 = vadd.s32 %v367, %v368
      %v370 = vstv %s97
      %v371 = vand.u32 %v110, %v370
      %v372 = vadd.s32 %v369, %v371
      %v373 = vstv %s94
      %v374 = vmul.u32 %v111, %v373
      %v375 = vstv %s96
      %v376 = vmul.u32 %v111, %v375
      %v377 = vmul.u32 %v112, %v373
      %v378 = vmul.u32 %v112, %v375
      %v379 = vshrl.u32 %v374, 16
      %v380 = vand.u32 %v376, 65535
      %v381 = vadd.s32 %v379, %v380
      %v382 = vand.u32 %v377, 65535
      %v383 = vadd.s32 %v381, %v382
      %v384 = vstv %s90
      %v385 = vmul.u32 %v107, %v384
      %v386 = vshrl.u32 %v376, 16
      %v387 = vadd.s32 %v378, %v386
      %v388 = vshrl.u32 %v377, 16
      %v389 = vadd.s32 %v387, %v388
      %v390 = vshrl.u32 %v383, 16
      %v391 = vadd.s32 %v389, %v390
      %v392 = vstv %s98
      %v393 = vand.u32 %v110, %v392
      %v394 = vadd.s32 %v391, %v393
      %v395 = vmul.u32 %v113, %v351
      %v396 = vmul.u32 %v113, %v353
      %v397 = vmul.u32 %v114, %v351
      %v398 = vmul.u32 %v114, %v353
      %v399 = vshrl.u32 %v395, 16
      %v400 = vand.u32 %v396, 65535
      %v401 = vadd.s32 %v399, %v400
      %v402 = vand.u32 %v397, 65535
      %v403 = vadd.s32 %v401, %v402
      %v404 = vmul.u32 %v109, %v362
      %v405 = vshrl.u32 %v396, 16
      %v406 = vadd.s32 %v398, %v405
      %v407 = vshrl.u32 %v397, 16
      %v408 = vadd.s32 %v406, %v407
      %v409 = vshrl.u32 %v403, 16
      %v410 = vadd.s32 %v408, %v409
      %v411 = vadd.s32 %v385, %v404
      %v412 = vadd.s32 %v394, %v410
      %v413 = vadd.s32 %v411, 2147483648
      %v414 = vadd.s32 %v385, 2147483648
      %vm415 = vcmp.lt.s32.totalorder %v413, %v414
      %v416 = vsel %vm415, 1, 0
      %v417 = vadd.s32 %v412, %v416
      %v418 = vadd.s32 %v363, %v417
      %v419 = vshra.s32 %v417, 31
      %v420 = vadd.s32 %v372, %v419
      %v421 = vadd.s32 %v418, 2147483648
      %v422 = vadd.s32 %v363, 2147483648
      %vm423 = vcmp.lt.s32.totalorder %v421, %v422
      %v424 = vsel %vm423, 1, 0
      %v425 = vadd.s32 %v420, %v424
      %v426 = vshra.s32 %v425, 11
      %s427 = sadd.s32 %s105, 48
      %s428 = scalar_lea.vmem [#allocation10], %s427
      %429 = vst [vmem:[%s428] sm:$0xff] %v426
    $region22: #{tpu_custom_call.1} parent=1 // loop_footer
      %s104 = sadd.s32 1, %s100
    $region23: #{tpu_custom_call.1} parent=1 // loop_footer_branch
      %99 = sbr.rel target = $region19
    $region24: #{tpu_custom_call.1} parent=1 // loop_exit
      _
    // Predicated region
    $region25: #{tpu_custom_call.1} parent=1 // pred_check
      _
    $region26: #{tpu_custom_call.1} parent=1 // pred_check_branch
      %431 = sbr.rel (0) target = $region28
    $region27: #{tpu_custom_call.1} parent=1 // pred_region
      %433 = vsyncadd [#allocation7], 0
      %s434 = sshll.u32 [#allocation10], 4
      %s435 = int_to_ptr.vmem [resolvable:$true] %s434
      %s436 = sshll.u32 %s4, 4
      %s437 = int_to_ptr.hbm [resolvable:$true] %s436
      %442 = dma.vmem_to_hbm [thread:$0]  %s435, 1024, %s437, [#allocation7], 128, 128, 8
    $region28: #{tpu_custom_call.1} parent=1 // pred_fallthru
      _
    // Predicated region
    $region29: #{tpu_custom_call.1} parent=1 // pred_check
      _
    $region30: #{tpu_custom_call.1} parent=1 // pred_check_branch
      %444 = sbr.rel (0) target = $region32
    $region31: #{tpu_custom_call.1} parent=1 // pred_region
      %446 = dma.done [#allocation7], 1024
    $region32: #{tpu_custom_call.1} parent=1 // pred_fallthru
      _
    %447 = vsyncpa [#allocation6], 1
    %448 = vsyncpa [#allocation9], 1
    %449 = vsyncpa [#allocation7], 1

</llo_original>
